<compile_context>
chip_gen: v5e
topology: v5e:2x2
jax: 0.10.0
libtpu: 0.0.40
codegen_flags: <defaults>
</compile_context>

<pallas_src>
import functools
from typing import NamedTuple

import jax
import jax.numpy as jnp
from jax.experimental import pallas as pl
from jax.experimental.pallas import tpu as pltpu


def _round_up(x, m):
    return ((x + m - 1) // m) * m


def _default_lane_multiple():
    # v6e/v7x MXUs are 256x256; v2-v5 are 128x128.
    try:
        kind = jax.devices()[0].device_kind.lower()
        if any(v in kind for v in ("v2", "v3", "v4", "v5")):
            return 128
        return 256
    except Exception:
        return 128


class ControlNetParams(NamedTuple):
    w1: jax.Array   # (K, H)  compute dtype
    b1: jax.Array   # (1, H)  float32
    w2: jax.Array   # (H, H)
    b2: jax.Array   # (1, H)
    w3: jax.Array   # (H, N)
    b3: jax.Array   # (1, N)
    n_output: int


def prepare_params(w1, b1, w2, b2, w3, b3, *, compute_dtype=jnp.bfloat16,
                   lane_multiple=None):
    """Pad + cast the weights once. Cache the result; do NOT call per forward."""
    if lane_multiple is None:
        lane_multiple = _default_lane_multiple()
    n_input, n_hidden = w1.shape
    n_output = w3.shape[1]
    K = _round_up(n_input, 128)
    H = _round_up(n_hidden, lane_multiple)
    N = _round_up(n_output, lane_multiple)

    cd, f32 = compute_dtype, jnp.float32
    # Zero padding is exact: padded hidden columns get zero weights + zero bias,
    # ReLU(0) = 0, so they contribute nothing downstream; padded output columns
    # and padded batch rows are sliced away by the wrapper.
    w1p = jnp.zeros((K, H), cd).at[:n_input, :n_hidden].set(w1.astype(cd))
    w2p = jnp.zeros((H, H), cd).at[:n_hidden, :n_hidden].set(w2.astype(cd))
    w3p = jnp.zeros((H, N), cd).at[:n_hidden, :n_output].set(w3.astype(cd))
    b1p = jnp.zeros((1, H), f32).at[:, :n_hidden].set(b1.reshape(1, -1).astype(f32))
    b2p = jnp.zeros((1, H), f32).at[:, :n_hidden].set(b2.reshape(1, -1).astype(f32))
    b3p = jnp.zeros((1, N), f32).at[:, :n_output].set(b3.reshape(1, -1).astype(f32))
    return ControlNetParams(w1p, b1p, w2p, b2p, w3p, b3p, n_output)


def _controlnet_kernel(x_ref, w1_ref, b1_ref, w2_ref, b2_ref, w3_ref, b3_ref, o_ref):
    # layer1 + ReLU (the PyTorch code names the activation `sigmoid` but it is nn.ReLU)
    h1 = jnp.dot(x_ref[...], w1_ref[...], preferred_element_type=jnp.float32)
    h1 = jnp.maximum(h1 + b1_ref[...], 0.0)                     # f32 epilogue
    # layer2 + ReLU
    h2 = jnp.dot(h1.astype(w2_ref.dtype), w2_ref[...],
                 preferred_element_type=jnp.float32)
    h2 = jnp.maximum(h2 + b2_ref[...], 0.0)
    # layer3 (no activation)
    out = jnp.dot(h2.astype(w3_ref.dtype), w3_ref[...],
                  preferred_element_type=jnp.float32)
    o_ref[...] = (out + b3_ref[...]).astype(o_ref.dtype)


@functools.partial(jax.jit,
                   static_argnames=("n_output", "block_b", "single_buffer_weights"))
def _controlnet_forward_padded(x, w1p, b1p, w2p, b2p, w3p, b3p, *,
                               n_output, block_b, single_buffer_weights):
    B, n_input = x.shape
    K, H = w1p.shape
    N = w3p.shape[1]
    cd = w1p.dtype
    itemsize = jnp.dtype(cd).itemsize

    # ---- Balanced batch tiling: tiles of ~block_b that divide B evenly (bounded
    # padding waste), rounded to the sublane packing of the compute dtype.
    sublane = max(8, 32 // itemsize)                 # 8 f32, 16 bf16, 32 int8/fp8
    n_tiles = pl.cdiv(B, block_b)
    TB = _round_up(pl.cdiv(B, n_tiles), sublane)
    Bp = _round_up(B, TB)
    n_tiles = Bp // TB

    # ---- Pad / cast x only when actually needed.
    x = x.astype(cd)
    if Bp != B or K != n_input:
        x = jnp.zeros((Bp, K), cd).at[:B, :n_input].set(x)

    # ---- VMEM budget from the real footprint: resident weights (1x or 2x
    # buffered) + pipelined x/out tiles + f32 intermediates, ~30% headroom.
    w_bufs = 1 if single_buffer_weights else 2
    weight_bytes = (K * H + H * H + H * N) * itemsize + (2 * H + N) * 4
    io_bytes = 2 * TB * (K + N) * itemsize
    interm_bytes = 2 * TB * H * 4
    vmem_limit = int(1.3 * (w_bufs * weight_bytes + io_bytes + interm_bytes))
    vmem_limit = min(max(vmem_limit, 32 * 1024 * 1024), 128 * 1024 * 1024)
    # TODO(synk): when resident HxH weights exceed v7x's 64 MiB even single-buffered,
    # fall back to an H-tiled reduction (second "arbitrary" grid axis + VMEM f32
    # accumulator) instead of forcing w2/w3 fully resident.

    if single_buffer_weights:
        # Constant block index -> never re-fetched; 1 buffer halves weight VMEM.
        resident = lambda shape: pl.BlockSpec(shape, lambda i: (0, 0),
                                              pipeline_mode=pl.Buffered(1))
    else:
        resident = lambda shape: pl.BlockSpec(shape, lambda i: (0, 0))

    cost = pl.CostEstimate(
        flops=2 * Bp * (K * H + H * H + H * N),
        transcendentals=0,
        bytes_accessed=(Bp * K + K * H + H * H + H * N + Bp * N) * itemsize
        + (2 * H + N) * 4,
    )

    out = pl.pallas_call(
        _controlnet_kernel,
        out_shape=jax.ShapeDtypeStruct((Bp, N), cd),   # writeback in compute dtype
        grid=(n_tiles,),
        in_specs=[
            pl.BlockSpec((TB, K), lambda i: (i, 0)),   # x: tiled over batch
            resident((K, H)), resident((1, H)),        # w1, b1 (stay in VMEM)
            resident((H, H)), resident((1, H)),        # w2, b2
            resident((H, N)), resident((1, N)),        # w3, b3
        ],
        out_specs=pl.BlockSpec((TB, N), lambda i: (i, 0)),
        compiler_params=pltpu.CompilerParams(
            dimension_semantics=("parallel",),         # shard batch tiles on v7x
            vmem_limit_bytes=vmem_limit,
        ),
        cost_estimate=cost,
    )(x, w1p, b1p, w2p, b2p, w3p, b3p)

    return out[:B, :n_output]


def controlnet_forward(x, params, *, block_b=512, single_buffer_weights=True):
    """Fused ControlNet forward. `params` comes from prepare_params (cached)."""
    return _controlnet_forward_padded(
        x, params.w1, params.b1, params.w2, params.b2, params.w3, params.b3,
        n_output=params.n_output, block_b=block_b,
        single_buffer_weights=single_buffer_weights)


def init_params(key, n_input, n_hidden, n_output):
    # Deterministic synthetic init (PyTorch-Linear-style uniform ranges), no checkpoint.
    ks = jax.random.split(key, 6)

    def uniform(k, shape, fan_in):
        bound = 1.0 / jnp.sqrt(jnp.float32(fan_in))
        return jax.random.uniform(k, shape, jnp.float32, -bound, bound)

    # weights stored as (in, out); biases as (1, out)
    w1 = uniform(ks[0], (n_input, n_hidden), n_input)
    b1 = uniform(ks[1], (1, n_hidden), n_input)
    w2 = uniform(ks[2], (n_hidden, n_hidden), n_hidden)
    b2 = uniform(ks[3], (1, n_hidden), n_hidden)
    w3 = uniform(ks[4], (n_hidden, n_output), n_hidden)
    b3 = uniform(ks[5], (1, n_output), n_hidden)
    return w1, b1, w2, b2, w3, b3


if __name__ == "__main__":
    key = jax.random.PRNGKey(0)
    k_x, k_p = jax.random.split(key)

    B, n_input, n_hidden, n_output = 8, 16, 32, 8
    x = jax.random.normal(k_x, (B, n_input), jnp.float32)
    w1, b1, w2, b2, w3, b3 = init_params(k_p, n_input, n_hidden, n_output)

    # Pure-JAX reference (same math as the PyTorch forward).
    h1 = jnp.maximum(x @ w1 + b1, 0.0)
    h2 = jnp.maximum(h1 @ w2 + b2, 0.0)
    ref = h2 @ w3 + b3

    # f32 path -- also probes single-buffered resident weights (pl.Buffered(1));
    # falls back to default buffering if this jax build does not support it.
    params_f32 = prepare_params(w1, b1, w2, b2, w3, b3, compute_dtype=jnp.float32)
    single_buf = True
    try:
        out_f32 = jax.block_until_ready(
            controlnet_forward(x, params_f32, single_buffer_weights=True))
    except Exception:
        single_buf = False
        out_f32 = jax.block_until_ready(
            controlnet_forward(x, params_f32, single_buffer_weights=False))

    assert out_f32.shape == (B, n_output)
    assert jnp.allclose(out_f32, ref, atol=1e-5, rtol=1e-5)

    # Default bf16 compute path (v5e/v6e/v7x MXU), f32 accumulation + f32 epilogue.
    params_bf16 = prepare_params(w1, b1, w2, b2, w3, b3)   # bf16 by default
    out_bf16 = jax.block_until_ready(
        controlnet_forward(x, params_bf16, single_buffer_weights=single_buf))
    assert out_bf16.shape == (B, n_output)
    assert out_bf16.dtype == jnp.bfloat16
    assert jnp.allclose(out_bf16.astype(jnp.float32), ref, atol=5e-2, rtol=5e-2)

    print("KERNEL_OK")
</pallas_src>

<mosaic_0001>
module attributes {stable_mosaic.version = 11 : i64} {
  func.func @_controlnet_kernel(%arg0: i32, %arg1: memref<8x128xf32, #tpu.memory_space<vmem>>, %arg2: memref<128x256xf32, #tpu.memory_space<vmem>>, %arg3: memref<1x256xf32, #tpu.memory_space<vmem>>, %arg4: memref<256x256xf32, #tpu.memory_space<vmem>>, %arg5: memref<1x256xf32, #tpu.memory_space<vmem>>, %arg6: memref<256x256xf32, #tpu.memory_space<vmem>>, %arg7: memref<1x256xf32, #tpu.memory_space<vmem>>, %arg8: memref<8x256xf32, #tpu.memory_space<vmem>>) attributes {dimension_semantics = [#tpu.dimension_semantics<parallel>], iteration_bounds = array<i64: 1>, scalar_prefetch = 0 : i64, scratch_operands = 0 : i64, tpu.core_type = #tpu.core_type<tc>, window_params = [{transform_indices = @transform_0, window_bounds = array<i64: 8, 128>}, {pipeline_mode = #tpu.pipeline_mode<synchronous>, transform_indices = @transform_1, window_bounds = array<i64: 128, 256>}, {pipeline_mode = #tpu.pipeline_mode<synchronous>, transform_indices = @transform_2, window_bounds = array<i64: 1, 256>}, {pipeline_mode = #tpu.pipeline_mode<synchronous>, transform_indices = @transform_3, window_bounds = array<i64: 256, 256>}, {pipeline_mode = #tpu.pipeline_mode<synchronous>, transform_indices = @transform_4, window_bounds = array<i64: 1, 256>}, {pipeline_mode = #tpu.pipeline_mode<synchronous>, transform_indices = @transform_5, window_bounds = array<i64: 256, 256>}, {pipeline_mode = #tpu.pipeline_mode<synchronous>, transform_indices = @transform_6, window_bounds = array<i64: 1, 256>}, {transform_indices = @transform_7, window_bounds = array<i64: 8, 256>}]} {
    %c0 = arith.constant 0 : index
    %c0_0 = arith.constant 0 : index
    %0 = vector.load %arg1[%c0, %c0_0] : memref<8x128xf32, #tpu.memory_space<vmem>>, vector<8x128xf32>
    %c0_1 = arith.constant 0 : index
    %c0_2 = arith.constant 0 : index
    %1 = vector.load %arg2[%c0_1, %c0_2] : memref<128x256xf32, #tpu.memory_space<vmem>>, vector<128x256xf32>
    %cst = arith.constant dense<0.000000e+00> : vector<8x256xf32>
    %2 = tpu.matmul %0, %1, %cst {dimension_numbers = #tpu.dot_dimension_numbers<[1], [0], [0], [1], [0, 0, 1, 1], [], []>} : vector<8x128xf32>, vector<128x256xf32>, vector<8x256xf32> -> vector<8x256xf32>
    %c0_3 = arith.constant 0 : index
    %c0_4 = arith.constant 0 : index
    %3 = vector.load %arg3[%c0_3, %c0_4] : memref<1x256xf32, #tpu.memory_space<vmem>>, vector<1x256xf32>
    %4 = vector.broadcast %3 : vector<1x256xf32> to vector<8x256xf32>
    %5 = arith.addf %2, %4 : vector<8x256xf32>
    %cst_5 = arith.constant 0.000000e+00 : f32
    %6 = vector.broadcast %cst_5 : f32 to vector<8x256xf32>
    %7 = arith.maximumf %5, %6 : vector<8x256xf32>
    %c0_6 = arith.constant 0 : index
    %c0_7 = arith.constant 0 : index
    %8 = vector.load %arg4[%c0_6, %c0_7] : memref<256x256xf32, #tpu.memory_space<vmem>>, vector<256x256xf32>
    %cst_8 = arith.constant dense<0.000000e+00> : vector<8x256xf32>
    %9 = tpu.matmul %7, %8, %cst_8 {dimension_numbers = #tpu.dot_dimension_numbers<[1], [0], [0], [1], [0, 0, 1, 1], [], []>} : vector<8x256xf32>, vector<256x256xf32>, vector<8x256xf32> -> vector<8x256xf32>
    %c0_9 = arith.constant 0 : index
    %c0_10 = arith.constant 0 : index
    %10 = vector.load %arg5[%c0_9, %c0_10] : memref<1x256xf32, #tpu.memory_space<vmem>>, vector<1x256xf32>
    %11 = vector.broadcast %10 : vector<1x256xf32> to vector<8x256xf32>
    %12 = arith.addf %9, %11 : vector<8x256xf32>
    %cst_11 = arith.constant 0.000000e+00 : f32
    %13 = vector.broadcast %cst_11 : f32 to vector<8x256xf32>
    %14 = arith.maximumf %12, %13 : vector<8x256xf32>
    %c0_12 = arith.constant 0 : index
    %c0_13 = arith.constant 0 : index
    %15 = vector.load %arg6[%c0_12, %c0_13] : memref<256x256xf32, #tpu.memory_space<vmem>>, vector<256x256xf32>
    %cst_14 = arith.constant dense<0.000000e+00> : vector<8x256xf32>
    %16 = tpu.matmul %14, %15, %cst_14 {dimension_numbers = #tpu.dot_dimension_numbers<[1], [0], [0], [1], [0, 0, 1, 1], [], []>} : vector<8x256xf32>, vector<256x256xf32>, vector<8x256xf32> -> vector<8x256xf32>
    %c0_15 = arith.constant 0 : index
    %c0_16 = arith.constant 0 : index
    %17 = vector.load %arg7[%c0_15, %c0_16] : memref<1x256xf32, #tpu.memory_space<vmem>>, vector<1x256xf32>
    %18 = vector.broadcast %17 : vector<1x256xf32> to vector<8x256xf32>
    %19 = arith.addf %16, %18 : vector<8x256xf32>
    %c0_17 = arith.constant 0 : index
    %c0_18 = arith.constant 0 : index
    %20 = vector.load %arg8[%c0_17, %c0_18] : memref<8x256xf32, #tpu.memory_space<vmem>>, vector<8x256xf32>
    tpu.vector_store %arg8[%c0_17, %c0_18], %19 {strides = array<i32>} : memref<8x256xf32, #tpu.memory_space<vmem>>, vector<8x256xf32>,
    return
  }
  func.func @transform_0(%arg0: i32) -> (i32, i32) {
    %c0_i32 = arith.constant 0 : i32
    %c0_i32_0 = arith.constant 0 : i32
    return %arg0, %c0_i32 : i32, i32
  }
  func.func @transform_1(%arg0: i32) -> (i32, i32) {
    %c0_i32 = arith.constant 0 : i32
    %c0_i32_0 = arith.constant 0 : i32
    %c0_i32_1 = arith.constant 0 : i32
    return %c0_i32, %c0_i32_0 : i32, i32
  }
  func.func @transform_2(%arg0: i32) -> (i32, i32) {
    %c0_i32 = arith.constant 0 : i32
    %c0_i32_0 = arith.constant 0 : i32
    %c0_i32_1 = arith.constant 0 : i32
    return %c0_i32, %c0_i32_0 : i32, i32
  }
  func.func @transform_3(%arg0: i32) -> (i32, i32) {
    %c0_i32 = arith.constant 0 : i32
    %c0_i32_0 = arith.constant 0 : i32
    %c0_i32_1 = arith.constant 0 : i32
    return %c0_i32, %c0_i32_0 : i32, i32
  }
  func.func @transform_4(%arg0: i32) -> (i32, i32) {
    %c0_i32 = arith.constant 0 : i32
    %c0_i32_0 = arith.constant 0 : i32
    %c0_i32_1 = arith.constant 0 : i32
    return %c0_i32, %c0_i32_0 : i32, i32
  }
  func.func @transform_5(%arg0: i32) -> (i32, i32) {
    %c0_i32 = arith.constant 0 : i32
    %c0_i32_0 = arith.constant 0 : i32
    %c0_i32_1 = arith.constant 0 : i32
    return %c0_i32, %c0_i32_0 : i32, i32
  }
  func.func @transform_6(%arg0: i32) -> (i32, i32) {
    %c0_i32 = arith.constant 0 : i32
    %c0_i32_0 = arith.constant 0 : i32
    %c0_i32_1 = arith.constant 0 : i32
    return %c0_i32, %c0_i32_0 : i32, i32
  }
  func.func @transform_7(%arg0: i32) -> (i32, i32) {
    %c0_i32 = arith.constant 0 : i32
    %c0_i32_0 = arith.constant 0 : i32
    return %arg0, %c0_i32 : i32, i32
  }
}

module attributes {stable_mosaic.version = 11 : i64} {
  func.func @_controlnet_kernel(%arg0: i32, %arg1: memref<8x128xf32, #tpu.memory_space<vmem>>, %arg2: memref<128x256xf32, #tpu.memory_space<vmem>>, %arg3: memref<1x256xf32, #tpu.memory_space<vmem>>, %arg4: memref<256x256xf32, #tpu.memory_space<vmem>>, %arg5: memref<1x256xf32, #tpu.memory_space<vmem>>, %arg6: memref<256x256xf32, #tpu.memory_space<vmem>>, %arg7: memref<1x256xf32, #tpu.memory_space<vmem>>, %arg8: memref<8x256xf32, #tpu.memory_space<vmem>>) attributes {dimension_semantics = [#tpu.dimension_semantics<parallel>], iteration_bounds = array<i64: 1>, scalar_prefetch = 0 : i64, scratch_operands = 0 : i64, tpu.core_type = #tpu.core_type<tc>, window_params = [{transform_indices = @transform_0, window_bounds = array<i64: 8, 128>}, {pipeline_mode = #tpu.pipeline_mode<synchronous>, transform_indices = @transform_1, window_bounds = array<i64: 128, 256>}, {pipeline_mode = #tpu.pipeline_mode<synchronous>, transform_indices = @transform_2, window_bounds = array<i64: 1, 256>}, {pipeline_mode = #tpu.pipeline_mode<synchronous>, transform_indices = @transform_3, window_bounds = array<i64: 256, 256>}, {pipeline_mode = #tpu.pipeline_mode<synchronous>, transform_indices = @transform_4, window_bounds = array<i64: 1, 256>}, {pipeline_mode = #tpu.pipeline_mode<synchronous>, transform_indices = @transform_5, window_bounds = array<i64: 256, 256>}, {pipeline_mode = #tpu.pipeline_mode<synchronous>, transform_indices = @transform_6, window_bounds = array<i64: 1, 256>}, {transform_indices = @transform_7, window_bounds = array<i64: 8, 256>}]} {
    %c0 = arith.constant 0 : index
    %c0_0 = arith.constant 0 : index
    %0 = vector.load %arg1[%c0, %c0_0] : memref<8x128xf32, #tpu.memory_space<vmem>>, vector<8x128xf32>
    %c0_1 = arith.constant 0 : index
    %c0_2 = arith.constant 0 : index
    %1 = vector.load %arg2[%c0_1, %c0_2] : memref<128x256xf32, #tpu.memory_space<vmem>>, vector<128x256xf32>
    %cst = arith.constant dense<0.000000e+00> : vector<8x256xf32>
    %2 = tpu.matmul %0, %1, %cst {dimension_numbers = #tpu.dot_dimension_numbers<[1], [0], [0], [1], [0, 0, 1, 1], [], []>} : vector<8x128xf32>, vector<128x256xf32>, vector<8x256xf32> -> vector<8x256xf32>
    %c0_3 = arith.constant 0 : index
    %c0_4 = arith.constant 0 : index
    %3 = vector.load %arg3[%c0_3, %c0_4] : memref<1x256xf32, #tpu.memory_space<vmem>>, vector<1x256xf32>
    %4 = vector.broadcast %3 : vector<1x256xf32> to vector<8x256xf32>
    %5 = arith.addf %2, %4 : vector<8x256xf32>
    %cst_5 = arith.constant 0.000000e+00 : f32
    %6 = vector.broadcast %cst_5 : f32 to vector<8x256xf32>
    %7 = arith.maximumf %5, %6 : vector<8x256xf32>
    %c0_6 = arith.constant 0 : index
    %c0_7 = arith.constant 0 : index
    %8 = vector.load %arg4[%c0_6, %c0_7] : memref<256x256xf32, #tpu.memory_space<vmem>>, vector<256x256xf32>
    %cst_8 = arith.constant dense<0.000000e+00> : vector<8x256xf32>
    %9 = tpu.matmul %7, %8, %cst_8 {dimension_numbers = #tpu.dot_dimension_numbers<[1], [0], [0], [1], [0, 0, 1, 1], [], []>} : vector<8x256xf32>, vector<256x256xf32>, vector<8x256xf32> -> vector<8x256xf32>
    %c0_9 = arith.constant 0 : index
    %c0_10 = arith.constant 0 : index
    %10 = vector.load %arg5[%c0_9, %c0_10] : memref<1x256xf32, #tpu.memory_space<vmem>>, vector<1x256xf32>
    %11 = vector.broadcast %10 : vector<1x256xf32> to vector<8x256xf32>
    %12 = arith.addf %9, %11 : vector<8x256xf32>
    %cst_11 = arith.constant 0.000000e+00 : f32
    %13 = vector.broadcast %cst_11 : f32 to vector<8x256xf32>
    %14 = arith.maximumf %12, %13 : vector<8x256xf32>
    %c0_12 = arith.constant 0 : index
    %c0_13 = arith.constant 0 : index
    %15 = vector.load %arg6[%c0_12, %c0_13] : memref<256x256xf32, #tpu.memory_space<vmem>>, vector<256x256xf32>
    %cst_14 = arith.constant dense<0.000000e+00> : vector<8x256xf32>
    %16 = tpu.matmul %14, %15, %cst_14 {dimension_numbers = #tpu.dot_dimension_numbers<[1], [0], [0], [1], [0, 0, 1, 1], [], []>} : vector<8x256xf32>, vector<256x256xf32>, vector<8x256xf32> -> vector<8x256xf32>
    %c0_15 = arith.constant 0 : index
    %c0_16 = arith.constant 0 : index
    %17 = vector.load %arg7[%c0_15, %c0_16] : memref<1x256xf32, #tpu.memory_space<vmem>>, vector<1x256xf32>
    %18 = vector.broadcast %17 : vector<1x256xf32> to vector<8x256xf32>
    %19 = arith.addf %16, %18 : vector<8x256xf32>
    %c0_17 = arith.constant 0 : index
    %c0_18 = arith.constant 0 : index
    %20 = vector.load %arg8[%c0_17, %c0_18] : memref<8x256xf32, #tpu.memory_space<vmem>>, vector<8x256xf32>
    tpu.vector_store %arg8[%c0_17, %c0_18], %19 {strides = array<i32>} : memref<8x256xf32, #tpu.memory_space<vmem>>, vector<8x256xf32>,
    return
  }
  func.func @transform_0(%arg0: i32) -> (i32, i32) {
    %c0_i32 = arith.constant 0 : i32
    %c0_i32_0 = arith.constant 0 : i32
    return %arg0, %c0_i32 : i32, i32
  }
  func.func @transform_1(%arg0: i32) -> (i32, i32) {
    %c0_i32 = arith.constant 0 : i32
    %c0_i32_0 = arith.constant 0 : i32
    %c0_i32_1 = arith.constant 0 : i32
    return %c0_i32, %c0_i32_0 : i32, i32
  }
  func.func @transform_2(%arg0: i32) -> (i32, i32) {
    %c0_i32 = arith.constant 0 : i32
    %c0_i32_0 = arith.constant 0 : i32
    %c0_i32_1 = arith.constant 0 : i32
    return %c0_i32, %c0_i32_0 : i32, i32
  }
  func.func @transform_3(%arg0: i32) -> (i32, i32) {
    %c0_i32 = arith.constant 0 : i32
    %c0_i32_0 = arith.constant 0 : i32
    %c0_i32_1 = arith.constant 0 : i32
    return %c0_i32, %c0_i32_0 : i32, i32
  }
  func.func @transform_4(%arg0: i32) -> (i32, i32) {
    %c0_i32 = arith.constant 0 : i32
    %c0_i32_0 = arith.constant 0 : i32
    %c0_i32_1 = arith.constant 0 : i32
    return %c0_i32, %c0_i32_0 : i32, i32
  }
  func.func @transform_5(%arg0: i32) -> (i32, i32) {
    %c0_i32 = arith.constant 0 : i32
    %c0_i32_0 = arith.constant 0 : i32
    %c0_i32_1 = arith.constant 0 : i32
    return %c0_i32, %c0_i32_0 : i32, i32
  }
  func.func @transform_6(%arg0: i32) -> (i32, i32) {
    %c0_i32 = arith.constant 0 : i32
    %c0_i32_0 = arith.constant 0 : i32
    %c0_i32_1 = arith.constant 0 : i32
    return %c0_i32, %c0_i32_0 : i32, i32
  }
  func.func @transform_7(%arg0: i32) -> (i32, i32) {
    %c0_i32 = arith.constant 0 : i32
    %c0_i32_0 = arith.constant 0 : i32
    return %arg0, %c0_i32 : i32, i32
  }
}

</mosaic_0001>

<llo_original>
// kernel: _controlnet_forward_padded.1
$region0: #{_controlnet_forward_padded.1}
  #allocation0 [shape = 'u32[]', space=smem, size = 0x4, offset = 0x4, fixed_abs, tag = 'smem constant byte address 0x4 - core index']
  #allocation1 [shape = 'u32[72,128]{1,0:T(1,128)}', space=vmem, size = 0x9000, scoped, tag = 'internal scratch']
  %s0 = inlined_call_operand.vmem [shape: f32[8,128], index: 0, kind: input, shape index: {}]
  %s1 = inlined_call_operand.hbm [shape: f32[128,256], index: 1, kind: input, shape index: {}]
  %s2 = inlined_call_operand.vmem [shape: f32[1,256], index: 2, kind: input, shape index: {}]
  %s3 = inlined_call_operand.hbm [shape: f32[256,256], index: 3, kind: input, shape index: {}]
  %s4 = inlined_call_operand.vmem [shape: f32[1,256], index: 4, kind: input, shape index: {}]
  %s5 = inlined_call_operand.hbm [shape: f32[256,256], index: 5, kind: input, shape index: {}]
  %s6 = inlined_call_operand.vmem [shape: f32[1,256], index: 6, kind: input, shape index: {}]
  %s7 = inlined_call_operand.vmem [shape: f32[8,256], index: 7, kind: output, shape index: {}]
  %s8 = sld [smem:[#allocation0]]
  $region50: #{_controlnet_forward_padded.1} parent=0
    _
  %s10 = ssub.s32 1, %s8
  %s11 = scalar_select 0, %s10, %s8
  $region1: #{_controlnet_forward_padded.1} parent=0
    #allocation2 [shape = 'u8[131072]{0}', space=vmem, size = 0x20000, scoped, tag = 'input window, operand 1, single buffered']
    #allocation3 [shape = 's32[1]{0}', space=sflag, size = 0x4, scoped, tag = 'scoped memory for _controlnet_forward_padded.1']
    #allocation4 [shape = 'u8[262144]{0}', space=vmem, size = 0x40000, scoped, tag = 'input window, operand 3, single buffered']
    #allocation5 [shape = 's32[1]{0}', space=sflag, size = 0x4, scoped, tag = 'scoped memory for _controlnet_forward_padded.1']
    #allocation6 [shape = 'u8[262144]{0}', space=vmem, size = 0x40000, scoped, tag = 'input window, operand 5, single buffered']
    %12 = vsyncpa [#allocation3], 0
    %13 = vsyncpa [#allocation5], 0
    // Predicated region
    $region2: #{_controlnet_forward_padded.1} parent=1 // pred_check
      _
    $region3: #{_controlnet_forward_padded.1} parent=1 // pred_check_branch
      %15 = sbr.rel (0) target = $region5
    $region4: #{_controlnet_forward_padded.1} parent=1 // pred_region
      _
    $region5: #{_controlnet_forward_padded.1} parent=1 // pred_fallthru
      _
    // Predicated region
    $region6: #{_controlnet_forward_padded.1} parent=1 // pred_check
      _
    $region7: #{_controlnet_forward_padded.1} parent=1 // pred_check_branch
      %17 = sbr.rel (0) target = $region9
    $region8: #{_controlnet_forward_padded.1} parent=1 // pred_region
      %19 = vsyncadd [#allocation3], 0
      %s20 = sshll.u32 %s1, 4
      %s21 = int_to_ptr.hbm [resolvable:$true] %s20
      %s22 = sshll.u32 [#allocation2], 4
      %s23 = int_to_ptr.vmem [resolvable:$true] %s22
      %28 = dma.hbm_to_vmem [thread:$0]  %s21, 4096, %s23, [#allocation3], 256, 256, 16
    $region9: #{_controlnet_forward_padded.1} parent=1 // pred_fallthru
      _
    // Predicated region
    $region10: #{_controlnet_forward_padded.1} parent=1 // pred_check
      _
    $region11: #{_controlnet_forward_padded.1} parent=1 // pred_check_branch
      %30 = sbr.rel (0) target = $region13
    $region12: #{_controlnet_forward_padded.1} parent=1 // pred_region
      _
    $region13: #{_controlnet_forward_padded.1} parent=1 // pred_fallthru
      _
    // Predicated region
    $region14: #{_controlnet_forward_padded.1} parent=1 // pred_check
      _
    $region15: #{_controlnet_forward_padded.1} parent=1 // pred_check_branch
      %32 = sbr.rel (0) target = $region17
    $region16: #{_controlnet_forward_padded.1} parent=1 // pred_region
      %34 = vsyncadd [#allocation5], 0
      %s35 = sshll.u32 %s3, 4
      %s36 = int_to_ptr.hbm [resolvable:$true] %s35
      %s37 = sshll.u32 [#allocation4], 4
      %s38 = int_to_ptr.vmem [resolvable:$true] %s37
      %43 = dma.hbm_to_vmem [thread:$0]  %s36, 8192, %s38, [#allocation5], 256, 256, 16
    $region17: #{_controlnet_forward_padded.1} parent=1 // pred_fallthru
      _
    // Predicated region
    $region18: #{_controlnet_forward_padded.1} parent=1 // pred_check
      _
    $region19: #{_controlnet_forward_padded.1} parent=1 // pred_check_branch
      %45 = sbr.rel (0) target = $region21
    $region20: #{_controlnet_forward_padded.1} parent=1 // pred_region
      _
    $region21: #{_controlnet_forward_padded.1} parent=1 // pred_fallthru
      _
    // Predicated region
    $region22: #{_controlnet_forward_padded.1} parent=1 // pred_check
      _
    $region23: #{_controlnet_forward_padded.1} parent=1 // pred_check_branch
      %47 = sbr.rel (0) target = $region25
    $region24: #{_controlnet_forward_padded.1} parent=1 // pred_region
      %49 = vsyncadd [#allocation5], 0
      %s50 = sshll.u32 %s5, 4
      %s51 = int_to_ptr.hbm [resolvable:$true] %s50
      %s52 = sshll.u32 [#allocation6], 4
      %s53 = int_to_ptr.vmem [resolvable:$true] %s52
      %58 = dma.hbm_to_vmem [thread:$0]  %s51, 8192, %s53, [#allocation5], 256, 256, 16
    $region25: #{_controlnet_forward_padded.1} parent=1 // pred_fallthru
      _
    // Predicated region
    $region26: #{_controlnet_forward_padded.1} parent=1 // pred_check
      _
    $region27: #{_controlnet_forward_padded.1} parent=1 // pred_check_branch
      %60 = sbr.rel (0) target = $region29
    $region28: #{_controlnet_forward_padded.1} parent=1 // pred_region
      _
    $region29: #{_controlnet_forward_padded.1} parent=1 // pred_fallthru
      _
    // Predicated region
    $region30: #{_controlnet_forward_padded.1} parent=1 // pred_check
      _
    $region31: #{_controlnet_forward_padded.1} parent=1 // pred_check_branch
      %62 = sbr.rel (0) target = $region33
    $region32: #{_controlnet_forward_padded.1} parent=1 // pred_region
      %64 = dma.done [#allocation3], 4096
    $region33: #{_controlnet_forward_padded.1} parent=1 // pred_fallthru
      _
    // Predicated region
    $region34: #{_controlnet_forward_padded.1} parent=1 // pred_check
      _
    $region35: #{_controlnet_forward_padded.1} parent=1 // pred_check_branch
      %66 = sbr.rel (0) target = $region37
    $region36: #{_controlnet_forward_padded.1} parent=1 // pred_region
      %68 = dma.done [#allocation5], 8192
    $region37: #{_controlnet_forward_padded.1} parent=1 // pred_fallthru
      _
    // Predicated region
    $region38: #{_controlnet_forward_padded.1} parent=1 // pred_check
      _
    $region39: #{_controlnet_forward_padded.1} parent=1 // pred_check_branch
      %70 = sbr.rel (0) target = $region41
    $region40: #{_controlnet_forward_padded.1} parent=1 // pred_region
      %72 = dma.done [#allocation5], 8192
    $region41: #{_controlnet_forward_padded.1} parent=1 // pred_fallthru
      _
    %v73 = vld [vmem:[%s0] sm:$0xff]
    %v74 = vld [vmem:[#allocation2] sm:$0xff]
    %v75 = vld [vmem:[#allocation2 + $0x8] sm:$0xff]
    %v76 = vld [vmem:[#allocation2 + $0x10] sm:$0xff]
    %v77 = vld [vmem:[#allocation2 + $0x18] sm:$0xff]
    %v78 = vld [vmem:[#allocation2 + $0x20] sm:$0xff]
    %v79 = vld [vmem:[#allocation2 + $0x28] sm:$0xff]
    %v80 = vld [vmem:[#allocation2 + $0x30] sm:$0xff]
    %v81 = vld [vmem:[#allocation2 + $0x38] sm:$0xff]
    %v82 = vld [vmem:[#allocation2 + $0x40] sm:$0xff]
    %v83 = vld [vmem:[#allocation2 + $0x48] sm:$0xff]
    %v84 = vld [vmem:[#allocation2 + $0x50] sm:$0xff]
    %v85 = vld [vmem:[#allocation2 + $0x58] sm:$0xff]
    %v86 = vld [vmem:[#allocation2 + $0x60] sm:$0xff]
    %v87 = vld [vmem:[#allocation2 + $0x68] sm:$0xff]
    %v88 = vld [vmem:[#allocation2 + $0x70] sm:$0xff]
    %v89 = vld [vmem:[#allocation2 + $0x78] sm:$0xff]
    %v90 = vld [vmem:[#allocation2 + $0x80] sm:$0xff]
    %v91 = vld [vmem:[#allocation2 + $0x88] sm:$0xff]
    %v92 = vld [vmem:[#allocation2 + $0x90] sm:$0xff]
    %v93 = vld [vmem:[#allocation2 + $0x98] sm:$0xff]
    %v94 = vld [vmem:[#allocation2 + $0xa0] sm:$0xff]
    %v95 = vld [vmem:[#allocation2 + $0xa8] sm:$0xff]
    %v96 = vld [vmem:[#allocation2 + $0xb0] sm:$0xff]
    %v97 = vld [vmem:[#allocation2 + $0xb8] sm:$0xff]
    %v98 = vld [vmem:[#allocation2 + $0xc0] sm:$0xff]
    %v99 = vld [vmem:[#allocation2 + $0xc8] sm:$0xff]
    %v100 = vld [vmem:[#allocation2 + $0xd0] sm:$0xff]
    %v101 = vld [vmem:[#allocation2 + $0xd8] sm:$0xff]
    %v102 = vld [vmem:[#allocation2 + $0xe0] sm:$0xff]
    %v103 = vld [vmem:[#allocation2 + $0xe8] sm:$0xff]
    %v104 = vld [vmem:[#allocation2 + $0xf0] sm:$0xff]
    %v105 = vld [vmem:[#allocation2 + $0xf8] sm:$0xff]
    %v106 = vld [vmem:[%s2] sm:$0x3]
    %v108 = vperm.slane %v106, 0
    %v109 = vperm.slane %v106, 1
    %112 = vmatpush.msra.mxu0 %v104
    %113 = vmatpush.msra.mxu0 %v102
    %114 = vmatpush.msra.mxu0 %v100
    %115 = vmatpush.msra.mxu0 %v98
    %116 = vmatpush.msra.mxu0 %v96
    %117 = vmatpush.msra.mxu0 %v94
    %118 = vmatpush.msra.mxu0 %v92
    %119 = vmatpush.msra.mxu0 %v90
    %120 = vmatpush.msra.mxu0 %v88
    %121 = vmatpush.msra.mxu0 %v86
    %122 = vmatpush.msra.mxu0 %v84
    %123 = vmatpush.msra.mxu0 %v82
    %124 = vmatpush.msra.mxu0 %v80
    %125 = vmatpush.msra.mxu0 %v78
    %126 = vmatpush.msra.mxu0 %v76
    %127 = vmatpush.msra.mxu0 %v74
    %128 = vmatmul.f32.gmra.mxu0 %v73
    %v129 = vpop.f32.mrf.mxu0
    %v130 = vadd.f32 %v108, %v129
    %131 = vdwg.mxu0
    %132 = vmatpush.msra.mxu0 %v105
    %133 = vmatpush.msra.mxu0 %v103
    %134 = vmatpush.msra.mxu0 %v101
    %135 = vmatpush.msra.mxu0 %v99
    %136 = vmatpush.msra.mxu0 %v97
    %137 = vmatpush.msra.mxu0 %v95
    %138 = vmatpush.msra.mxu0 %v93
    %139 = vmatpush.msra.mxu0 %v91
    %140 = vmatpush.msra.mxu0 %v89
    %141 = vmatpush.msra.mxu0 %v87
    %142 = vmatpush.msra.mxu0 %v85
    %143 = vmatpush.msra.mxu0 %v83
    %144 = vmatpush.msra.mxu0 %v81
    %145 = vmatpush.msra.mxu0 %v79
    %146 = vmatpush.msra.mxu0 %v77
    %147 = vmatpush.msra.mxu0 %v75
    %148 = vmatmul.f32.gmra.mxu0 %v73
    %v149 = vpop.f32.mrf.mxu0
    %v150 = vadd.f32 %v109, %v149
    %151 = vdwg.mxu0
    %v152 = vmax.f32 %v130, 0.0
    %v153 = vmax.f32 %v150, 0.0
    %v154 = vld [vmem:[#allocation4] sm:$0xff]
    %v155 = vld [vmem:[#allocation4 + $0x8] sm:$0xff]
    %v156 = vld [vmem:[#allocation4 + $0x10] sm:$0xff]
    %v157 = vld [vmem:[#allocation4 + $0x18] sm:$0xff]
    %v158 = vld [vmem:[#allocation4 + $0x20] sm:$0xff]
    %v159 = vld [vmem:[#allocation4 + $0x28] sm:$0xff]
    %v160 = vld [vmem:[#allocation4 + $0x30] sm:$0xff]
    %v161 = vld [vmem:[#allocation4 + $0x38] sm:$0xff]
    %v162 = vld [vmem:[#allocation4 + $0x40] sm:$0xff]
    %v163 = vld [vmem:[#allocation4 + $0x48] sm:$0xff]
    %v164 = vld [vmem:[#allocation4 + $0x50] sm:$0xff]
    %v165 = vld [vmem:[#allocation4 + $0x58] sm:$0xff]
    %v166 = vld [vmem:[#allocation4 + $0x60] sm:$0xff]
    %v167 = vld [vmem:[#allocation4 + $0x68] sm:$0xff]
    %v168 = vld [vmem:[#allocation4 + $0x70] sm:$0xff]
    %v169 = vld [vmem:[#allocation4 + $0x78] sm:$0xff]
    %v170 = vld [vmem:[#allocation4 + $0x80] sm:$0xff]
    %v171 = vld [vmem:[#allocation4 + $0x88] sm:$0xff]
    %v172 = vld [vmem:[#allocation4 + $0x90] sm:$0xff]
    %v173 = vld [vmem:[#allocation4 + $0x98] sm:$0xff]
    %v174 = vld [vmem:[#allocation4 + $0xa0] sm:$0xff]
    %v175 = vld [vmem:[#allocation4 + $0xa8] sm:$0xff]
    %v176 = vld [vmem:[#allocation4 + $0xb0] sm:$0xff]
    %v177 = vld [vmem:[#allocation4 + $0xb8] sm:$0xff]
    %v178 = vld [vmem:[#allocation4 + $0xc0] sm:$0xff]
    %v179 = vld [vmem:[#allocation4 + $0xc8] sm:$0xff]
    %v180 = vld [vmem:[#allocation4 + $0xd0] sm:$0xff]
    %v181 = vld [vmem:[#allocation4 + $0xd8] sm:$0xff]
    %v182 = vld [vmem:[#allocation4 + $0xe0] sm:$0xff]
    %v183 = vld [vmem:[#allocation4 + $0xe8] sm:$0xff]
    %v184 = vld [vmem:[#allocation4 + $0xf0] sm:$0xff]
    %v185 = vld [vmem:[#allocation4 + $0xf8] sm:$0xff]
    %v186 = vld [vmem:[#allocation4 + $0x100] sm:$0xff]
    %v187 = vld [vmem:[#allocation4 + $0x108] sm:$0xff]
    %v188 = vld [vmem:[#allocation4 + $0x110] sm:$0xff]
    %v189 = vld [vmem:[#allocation4 + $0x118] sm:$0xff]
    %v190 = vld [vmem:[#allocation4 + $0x120] sm:$0xff]
    %v191 = vld [vmem:[#allocation4 + $0x128] sm:$0xff]
    %v192 = vld [vmem:[#allocation4 + $0x130] sm:$0xff]
    %v193 = vld [vmem:[#allocation4 + $0x138] sm:$0xff]
    %v194 = vld [vmem:[#allocation4 + $0x140] sm:$0xff]
    %v195 = vld [vmem:[#allocation4 + $0x148] sm:$0xff]
    %v196 = vld [vmem:[#allocation4 + $0x150] sm:$0xff]
    %v197 = vld [vmem:[#allocation4 + $0x158] sm:$0xff]
    %v198 = vld [vmem:[#allocation4 + $0x160] sm:$0xff]
    %v199 = vld [vmem:[#allocation4 + $0x168] sm:$0xff]
    %v200 = vld [vmem:[#allocation4 + $0x170] sm:$0xff]
    %v201 = vld [vmem:[#allocation4 + $0x178] sm:$0xff]
    %v202 = vld [vmem:[#allocation4 + $0x180] sm:$0xff]
    %v203 = vld [vmem:[#allocation4 + $0x188] sm:$0xff]
    %v204 = vld [vmem:[#allocation4 + $0x190] sm:$0xff]
    %v205 = vld [vmem:[#allocation4 + $0x198] sm:$0xff]
    %v206 = vld [vmem:[#allocation4 + $0x1a0] sm:$0xff]
    %v207 = vld [vmem:[#allocation4 + $0x1a8] sm:$0xff]
    %v208 = vld [vmem:[#allocation4 + $0x1b0] sm:$0xff]
    %v209 = vld [vmem:[#allocation4 + $0x1b8] sm:$0xff]
    %v210 = vld [vmem:[#allocation4 + $0x1c0] sm:$0xff]
    %v211 = vld [vmem:[#allocation4 + $0x1c8] sm:$0xff]
    %v212 = vld [vmem:[#allocation4 + $0x1d0] sm:$0xff]
    %v213 = vld [vmem:[#allocation4 + $0x1d8] sm:$0xff]
    %v214 = vld [vmem:[#allocation4 + $0x1e0] sm:$0xff]
    %v215 = vld [vmem:[#allocation4 + $0x1e8] sm:$0xff]
    %v216 = vld [vmem:[#allocation4 + $0x1f0] sm:$0xff]
    %v217 = vld [vmem:[#allocation4 + $0x1f8] sm:$0xff]
    %v218 = vld [vmem:[%s4] sm:$0x3]
    %v220 = vperm.slane %v218, 0
    %v221 = vperm.slane %v218, 1
    %224 = vmatpush.msra.mxu0 %v184
    %225 = vmatpush.msra.mxu0 %v182
    %226 = vmatpush.msra.mxu0 %v180
    %227 = vmatpush.msra.mxu0 %v178
    %228 = vmatpush.msra.mxu0 %v176
    %229 = vmatpush.msra.mxu0 %v174
    %230 = vmatpush.msra.mxu0 %v172
    %231 = vmatpush.msra.mxu0 %v170
    %232 = vmatpush.msra.mxu0 %v168
    %233 = vmatpush.msra.mxu0 %v166
    %234 = vmatpush.msra.mxu0 %v164
    %235 = vmatpush.msra.mxu0 %v162
    %236 = vmatpush.msra.mxu0 %v160
    %237 = vmatpush.msra.mxu0 %v158
    %238 = vmatpush.msra.mxu0 %v156
    %239 = vmatpush.msra.mxu0 %v154
    %240 = vmatmul.f32.gmra.mxu0 %v152
    %v241 = vpop.f32.mrf.mxu0
    %v242 = vadd.f32 %v220, %v241
    %243 = vdwg.mxu0
    %244 = vmatpush.msra.mxu0 %v216
    %245 = vmatpush.msra.mxu0 %v214
    %246 = vmatpush.msra.mxu0 %v212
    %247 = vmatpush.msra.mxu0 %v210
    %248 = vmatpush.msra.mxu0 %v208
    %249 = vmatpush.msra.mxu0 %v206
    %250 = vmatpush.msra.mxu0 %v204
    %251 = vmatpush.msra.mxu0 %v202
    %252 = vmatpush.msra.mxu0 %v200
    %253 = vmatpush.msra.mxu0 %v198
    %254 = vmatpush.msra.mxu0 %v196
    %255 = vmatpush.msra.mxu0 %v194
    %256 = vmatpush.msra.mxu0 %v192
    %257 = vmatpush.msra.mxu0 %v190
    %258 = vmatpush.msra.mxu0 %v188
    %259 = vmatpush.msra.mxu0 %v186
    %260 = vmatmul.f32.gmra.mxu0 %v153
    %v261 = vpop.f32.mrf.mxu0
    %v262 = vadd.f32 %v242, %v261
    %263 = vdwg.mxu0
    %264 = vmatpush.msra.mxu0 %v185
    %265 = vmatpush.msra.mxu0 %v183
    %266 = vmatpush.msra.mxu0 %v181
    %267 = vmatpush.msra.mxu0 %v179
    %268 = vmatpush.msra.mxu0 %v177
    %269 = vmatpush.msra.mxu0 %v175
    %270 = vmatpush.msra.mxu0 %v173
    %271 = vmatpush.msra.mxu0 %v171
    %272 = vmatpush.msra.mxu0 %v169
    %273 = vmatpush.msra.mxu0 %v167
    %274 = vmatpush.msra.mxu0 %v165
    %275 = vmatpush.msra.mxu0 %v163
    %276 = vmatpush.msra.mxu0 %v161
    %277 = vmatpush.msra.mxu0 %v159
    %278 = vmatpush.msra.mxu0 %v157
    %279 = vmatpush.msra.mxu0 %v155
    %280 = vmatmul.f32.gmra.mxu0 %v152
    %v281 = vpop.f32.mrf.mxu0
    %v282 = vadd.f32 %v221, %v281
    %283 = vdwg.mxu0
    %284 = vmatpush.msra.mxu0 %v217
    %285 = vmatpush.msra.mxu0 %v215
    %286 = vmatpush.msra.mxu0 %v213
    %287 = vmatpush.msra.mxu0 %v211
    %288 = vmatpush.msra.mxu0 %v209
    %289 = vmatpush.msra.mxu0 %v207
    %290 = vmatpush.msra.mxu0 %v205
    %291 = vmatpush.msra.mxu0 %v203
    %292 = vmatpush.msra.mxu0 %v201
    %293 = vmatpush.msra.mxu0 %v199
    %294 = vmatpush.msra.mxu0 %v197
    %295 = vmatpush.msra.mxu0 %v195
    %296 = vmatpush.msra.mxu0 %v193
    %297 = vmatpush.msra.mxu0 %v191
    %298 = vmatpush.msra.mxu0 %v189
    %299 = vmatpush.msra.mxu0 %v187
    %300 = vmatmul.f32.gmra.mxu0 %v153
    %v301 = vpop.f32.mrf.mxu0
    %v302 = vadd.f32 %v282, %v301
    %303 = vdwg.mxu0
    %v304 = vmax.f32 %v262, 0.0
    %v305 = vmax.f32 %v302, 0.0
    %v306 = vld [vmem:[#allocation6] sm:$0xff]
    %v307 = vld [vmem:[#allocation6 + $0x8] sm:$0xff]
    %v308 = vld [vmem:[#allocation6 + $0x10] sm:$0xff]
    %v309 = vld [vmem:[#allocation6 + $0x18] sm:$0xff]
    %v310 = vld [vmem:[#allocation6 + $0x20] sm:$0xff]
    %v311 = vld [vmem:[#allocation6 + $0x28] sm:$0xff]
    %v312 = vld [vmem:[#allocation6 + $0x30] sm:$0xff]
    %v313 = vld [vmem:[#allocation6 + $0x38] sm:$0xff]
    %v314 = vld [vmem:[#allocation6 + $0x40] sm:$0xff]
    %v315 = vld [vmem:[#allocation6 + $0x48] sm:$0xff]
    %v316 = vld [vmem:[#allocation6 + $0x50] sm:$0xff]
    %v317 = vld [vmem:[#allocation6 + $0x58] sm:$0xff]
    %v318 = vld [vmem:[#allocation6 + $0x60] sm:$0xff]
    %v319 = vld [vmem:[#allocation6 + $0x68] sm:$0xff]
    %v320 = vld [vmem:[#allocation6 + $0x70] sm:$0xff]
    %v321 = vld [vmem:[#allocation6 + $0x78] sm:$0xff]
    %v322 = vld [vmem:[#allocation6 + $0x80] sm:$0xff]
    %v323 = vld [vmem:[#allocation6 + $0x88] sm:$0xff]
    %v324 = vld [vmem:[#allocation6 + $0x90] sm:$0xff]
    %v325 = vld [vmem:[#allocation6 + $0x98] sm:$0xff]
    %v326 = vld [vmem:[#allocation6 + $0xa0] sm:$0xff]
    %v327 = vld [vmem:[#allocation6 + $0xa8] sm:$0xff]
    %v328 = vld [vmem:[#allocation6 + $0xb0] sm:$0xff]
    %v329 = vld [vmem:[#allocation6 + $0xb8] sm:$0xff]
    %v330 = vld [vmem:[#allocation6 + $0xc0] sm:$0xff]
    %v331 = vld [vmem:[#allocation6 + $0xc8] sm:$0xff]
    %v332 = vld [vmem:[#allocation6 + $0xd0] sm:$0xff]
    %v333 = vld [vmem:[#allocation6 + $0xd8] sm:$0xff]
    %v334 = vld [vmem:[#allocation6 + $0xe0] sm:$0xff]
    %v335 = vld [vmem:[#allocation6 + $0xe8] sm:$0xff]
    %v336 = vld [vmem:[#allocation6 + $0xf0] sm:$0xff]
    %v337 = vld [vmem:[#allocation6 + $0xf8] sm:$0xff]
    %v338 = vld [vmem:[#allocation6 + $0x100] sm:$0xff]
    %v339 = vld [vmem:[#allocation6 + $0x108] sm:$0xff]
    %v340 = vld [vmem:[#allocation6 + $0x110] sm:$0xff]
    %v341 = vld [vmem:[#allocation6 + $0x118] sm:$0xff]
    %v342 = vld [vmem:[#allocation6 + $0x120] sm:$0xff]
    %v343 = vld [vmem:[#allocation6 + $0x128] sm:$0xff]
    %v344 = vld [vmem:[#allocation6 + $0x130] sm:$0xff]
    %v345 = vld [vmem:[#allocation6 + $0x138] sm:$0xff]
    %v346 = vld [vmem:[#allocation6 + $0x140] sm:$0xff]
    %v347 = vld [vmem:[#allocation6 + $0x148] sm:$0xff]
    %v348 = vld [vmem:[#allocation6 + $0x150] sm:$0xff]
    %v349 = vld [vmem:[#allocation6 + $0x158] sm:$0xff]
    %v350 = vld [vmem:[#allocation6 + $0x160] sm:$0xff]
    %v351 = vld [vmem:[#allocation6 + $0x168] sm:$0xff]
    %v352 = vld [vmem:[#allocation6 + $0x170] sm:$0xff]
    %v353 = vld [vmem:[#allocation6 + $0x178] sm:$0xff]
    %v354 = vld [vmem:[#allocation6 + $0x180] sm:$0xff]
    %v355 = vld [vmem:[#allocation6 + $0x188] sm:$0xff]
    %v356 = vld [vmem:[#allocation6 + $0x190] sm:$0xff]
    %v357 = vld [vmem:[#allocation6 + $0x198] sm:$0xff]
    %v358 = vld [vmem:[#allocation6 + $0x1a0] sm:$0xff]
    %v359 = vld [vmem:[#allocation6 + $0x1a8] sm:$0xff]
    %v360 = vld [vmem:[#allocation6 + $0x1b0] sm:$0xff]
    %v361 = vld [vmem:[#allocation6 + $0x1b8] sm:$0xff]
    %v362 = vld [vmem:[#allocation6 + $0x1c0] sm:$0xff]
    %v363 = vld [vmem:[#allocation6 + $0x1c8] sm:$0xff]
    %v364 = vld [vmem:[#allocation6 + $0x1d0] sm:$0xff]
    %v365 = vld [vmem:[#allocation6 + $0x1d8] sm:$0xff]
    %v366 = vld [vmem:[#allocation6 + $0x1e0] sm:$0xff]
    %v367 = vld [vmem:[#allocation6 + $0x1e8] sm:$0xff]
    %v368 = vld [vmem:[#allocation6 + $0x1f0] sm:$0xff]
    %v369 = vld [vmem:[#allocation6 + $0x1f8] sm:$0xff]
    %v370 = vld [vmem:[%s6] sm:$0x3]
    %v372 = vperm.slane %v370, 0
    %v373 = vperm.slane %v370, 1
    %376 = vmatpush.msra.mxu0 %v336
    %377 = vmatpush.msra.mxu0 %v334
    %378 = vmatpush.msra.mxu0 %v332
    %379 = vmatpush.msra.mxu0 %v330
    %380 = vmatpush.msra.mxu0 %v328
    %381 = vmatpush.msra.mxu0 %v326
    %382 = vmatpush.msra.mxu0 %v324
    %383 = vmatpush.msra.mxu0 %v322
    %384 = vmatpush.msra.mxu0 %v320
    %385 = vmatpush.msra.mxu0 %v318
    %386 = vmatpush.msra.mxu0 %v316
    %387 = vmatpush.msra.mxu0 %v314
    %388 = vmatpush.msra.mxu0 %v312
    %389 = vmatpush.msra.mxu0 %v310
    %390 = vmatpush.msra.mxu0 %v308
    %391 = vmatpush.msra.mxu0 %v306
    %392 = vmatmul.f32.gmra.mxu0 %v304
    %v393 = vpop.f32.mrf.mxu0
    %v394 = vadd.f32 %v372, %v393
    %395 = vdwg.mxu0
    %396 = vmatpush.msra.mxu0 %v368
    %397 = vmatpush.msra.mxu0 %v366
    %398 = vmatpush.msra.mxu0 %v364
    %399 = vmatpush.msra.mxu0 %v362
    %400 = vmatpush.msra.mxu0 %v360
    %401 = vmatpush.msra.mxu0 %v358
    %402 = vmatpush.msra.mxu0 %v356
    %403 = vmatpush.msra.mxu0 %v354
    %404 = vmatpush.msra.mxu0 %v352
    %405 = vmatpush.msra.mxu0 %v350
    %406 = vmatpush.msra.mxu0 %v348
    %407 = vmatpush.msra.mxu0 %v346
    %408 = vmatpush.msra.mxu0 %v344
    %409 = vmatpush.msra.mxu0 %v342
    %410 = vmatpush.msra.mxu0 %v340
    %411 = vmatpush.msra.mxu0 %v338
    %412 = vmatmul.f32.gmra.mxu0 %v305
    %v413 = vpop.f32.mrf.mxu0
    %v414 = vadd.f32 %v394, %v413
    %415 = vdwg.mxu0
    %416 = vmatpush.msra.mxu0 %v337
    %417 = vmatpush.msra.mxu0 %v335
    %418 = vmatpush.msra.mxu0 %v333
    %419 = vmatpush.msra.mxu0 %v331
    %420 = vmatpush.msra.mxu0 %v329
    %421 = vmatpush.msra.mxu0 %v327
    %422 = vmatpush.msra.mxu0 %v325
    %423 = vmatpush.msra.mxu0 %v323
    %424 = vmatpush.msra.mxu0 %v321
    %425 = vmatpush.msra.mxu0 %v319
    %426 = vmatpush.msra.mxu0 %v317
    %427 = vmatpush.msra.mxu0 %v315
    %428 = vmatpush.msra.mxu0 %v313
    %429 = vmatpush.msra.mxu0 %v311
    %430 = vmatpush.msra.mxu0 %v309
    %431 = vmatpush.msra.mxu0 %v307
    %432 = vmatmul.f32.gmra.mxu0 %v304
    %v433 = vpop.f32.mrf.mxu0
    %v434 = vadd.f32 %v373, %v433
    %435 = vdwg.mxu0
    %436 = vmatpush.msra.mxu0 %v369
    %437 = vmatpush.msra.mxu0 %v367
    %438 = vmatpush.msra.mxu0 %v365
    %439 = vmatpush.msra.mxu0 %v363
    %440 = vmatpush.msra.mxu0 %v361
    %441 = vmatpush.msra.mxu0 %v359
    %442 = vmatpush.msra.mxu0 %v357
    %443 = vmatpush.msra.mxu0 %v355
    %444 = vmatpush.msra.mxu0 %v353
    %445 = vmatpush.msra.mxu0 %v351
    %446 = vmatpush.msra.mxu0 %v349
    %447 = vmatpush.msra.mxu0 %v347
    %448 = vmatpush.msra.mxu0 %v345
    %449 = vmatpush.msra.mxu0 %v343
    %450 = vmatpush.msra.mxu0 %v341
    %451 = vmatpush.msra.mxu0 %v339
    %452 = vmatmul.f32.gmra.mxu0 %v305
    %v453 = vpop.f32.mrf.mxu0
    %v454 = vadd.f32 %v434, %v453
    %455 = vdwg.mxu0
    %456 = vst [vmem:[%s7] sm:$0xff] %v414
    %457 = vst [vmem:[%s7 + $0x8] sm:$0xff] %v454
    // Predicated region
    $region42: #{_controlnet_forward_padded.1} parent=1 // pred_check
      _
    $region43: #{_controlnet_forward_padded.1} parent=1 // pred_check_branch
      %459 = sbr.rel (0) target = $region45
    $region44: #{_controlnet_forward_padded.1} parent=1 // pred_region
      _
    $region45: #{_controlnet_forward_padded.1} parent=1 // pred_fallthru
      _
    // Predicated region
    $region46: #{_controlnet_forward_padded.1} parent=1 // pred_check
      _
    $region47: #{_controlnet_forward_padded.1} parent=1 // pred_check_branch
      %461 = sbr.rel (0) target = $region49
    $region48: #{_controlnet_forward_padded.1} parent=1 // pred_region
      _
    $region49: #{_controlnet_forward_padded.1} parent=1 // pred_fallthru
      _
    %462 = vsyncpa [#allocation3], 1
    %463 = vsyncpa [#allocation5], 1

// kernel: _controlnet_forward_padded.1
$region0: #{_controlnet_forward_padded.1}
  #allocation0 [shape = 'u32[]', space=smem, size = 0x4, offset = 0x4, fixed_abs, tag = 'smem constant byte address 0x4 - core index']
  #allocation1 [shape = 'u32[72,128]{1,0:T(1,128)}', space=vmem, size = 0x9000, scoped, tag = 'internal scratch']
  %s0 = inlined_call_operand.vmem [shape: f32[8,128], index: 0, kind: input, shape index: {}]
  %s1 = inlined_call_operand.hbm [shape: f32[128,256], index: 1, kind: input, shape index: {}]
  %s2 = inlined_call_operand.vmem [shape: f32[1,256], index: 2, kind: input, shape index: {}]
  %s3 = inlined_call_operand.hbm [shape: f32[256,256], index: 3, kind: input, shape index: {}]
  %s4 = inlined_call_operand.vmem [shape: f32[1,256], index: 4, kind: input, shape index: {}]
  %s5 = inlined_call_operand.hbm [shape: f32[256,256], index: 5, kind: input, shape index: {}]
  %s6 = inlined_call_operand.vmem [shape: f32[1,256], index: 6, kind: input, shape index: {}]
  %s7 = inlined_call_operand.vmem [shape: f32[8,256], index: 7, kind: output, shape index: {}]
  %s8 = sld [smem:[#allocation0]]
  $region50: #{_controlnet_forward_padded.1} parent=0
    _
  %s10 = ssub.s32 1, %s8
  %s11 = scalar_select 0, %s10, %s8
  $region1: #{_controlnet_forward_padded.1} parent=0
    #allocation2 [shape = 'u8[131072]{0}', space=vmem, size = 0x20000, scoped, tag = 'input window, operand 1, single buffered']
    #allocation3 [shape = 's32[1]{0}', space=sflag, size = 0x4, scoped, tag = 'scoped memory for _controlnet_forward_padded.1']
    #allocation4 [shape = 'u8[262144]{0}', space=vmem, size = 0x40000, scoped, tag = 'input window, operand 3, single buffered']
    #allocation5 [shape = 's32[1]{0}', space=sflag, size = 0x4, scoped, tag = 'scoped memory for _controlnet_forward_padded.1']
    #allocation6 [shape = 'u8[262144]{0}', space=vmem, size = 0x40000, scoped, tag = 'input window, operand 5, single buffered']
    %12 = vsyncpa [#allocation3], 0
    %13 = vsyncpa [#allocation5], 0
    // Predicated region
    $region2: #{_controlnet_forward_padded.1} parent=1 // pred_check
      _
    $region3: #{_controlnet_forward_padded.1} parent=1 // pred_check_branch
      %15 = sbr.rel (0) target = $region5
    $region4: #{_controlnet_forward_padded.1} parent=1 // pred_region
      _
    $region5: #{_controlnet_forward_padded.1} parent=1 // pred_fallthru
      _
    // Predicated region
    $region6: #{_controlnet_forward_padded.1} parent=1 // pred_check
      _
    $region7: #{_controlnet_forward_padded.1} parent=1 // pred_check_branch
      %17 = sbr.rel (0) target = $region9
    $region8: #{_controlnet_forward_padded.1} parent=1 // pred_region
      %19 = vsyncadd [#allocation3], 0
      %s20 = sshll.u32 %s1, 4
      %s21 = int_to_ptr.hbm [resolvable:$true] %s20
      %s22 = sshll.u32 [#allocation2], 4
      %s23 = int_to_ptr.vmem [resolvable:$true] %s22
      %28 = dma.hbm_to_vmem [thread:$0]  %s21, 4096, %s23, [#allocation3], 256, 256, 16
    $region9: #{_controlnet_forward_padded.1} parent=1 // pred_fallthru
      _
    // Predicated region
    $region10: #{_controlnet_forward_padded.1} parent=1 // pred_check
      _
    $region11: #{_controlnet_forward_padded.1} parent=1 // pred_check_branch
      %30 = sbr.rel (0) target = $region13
    $region12: #{_controlnet_forward_padded.1} parent=1 // pred_region
      _
    $region13: #{_controlnet_forward_padded.1} parent=1 // pred_fallthru
      _
    // Predicated region
    $region14: #{_controlnet_forward_padded.1} parent=1 // pred_check
      _
    $region15: #{_controlnet_forward_padded.1} parent=1 // pred_check_branch
      %32 = sbr.rel (0) target = $region17
    $region16: #{_controlnet_forward_padded.1} parent=1 // pred_region
      %34 = vsyncadd [#allocation5], 0
      %s35 = sshll.u32 %s3, 4
      %s36 = int_to_ptr.hbm [resolvable:$true] %s35
      %s37 = sshll.u32 [#allocation4], 4
      %s38 = int_to_ptr.vmem [resolvable:$true] %s37
      %43 = dma.hbm_to_vmem [thread:$0]  %s36, 8192, %s38, [#allocation5], 256, 256, 16
    $region17: #{_controlnet_forward_padded.1} parent=1 // pred_fallthru
      _
    // Predicated region
    $region18: #{_controlnet_forward_padded.1} parent=1 // pred_check
      _
    $region19: #{_controlnet_forward_padded.1} parent=1 // pred_check_branch
      %45 = sbr.rel (0) target = $region21
    $region20: #{_controlnet_forward_padded.1} parent=1 // pred_region
      _
    $region21: #{_controlnet_forward_padded.1} parent=1 // pred_fallthru
      _
    // Predicated region
    $region22: #{_controlnet_forward_padded.1} parent=1 // pred_check
      _
    $region23: #{_controlnet_forward_padded.1} parent=1 // pred_check_branch
      %47 = sbr.rel (0) target = $region25
    $region24: #{_controlnet_forward_padded.1} parent=1 // pred_region
      %49 = vsyncadd [#allocation5], 0
      %s50 = sshll.u32 %s5, 4
      %s51 = int_to_ptr.hbm [resolvable:$true] %s50
      %s52 = sshll.u32 [#allocation6], 4
      %s53 = int_to_ptr.vmem [resolvable:$true] %s52
      %58 = dma.hbm_to_vmem [thread:$0]  %s51, 8192, %s53, [#allocation5], 256, 256, 16
    $region25: #{_controlnet_forward_padded.1} parent=1 // pred_fallthru
      _
    // Predicated region
    $region26: #{_controlnet_forward_padded.1} parent=1 // pred_check
      _
    $region27: #{_controlnet_forward_padded.1} parent=1 // pred_check_branch
      %60 = sbr.rel (0) target = $region29
    $region28: #{_controlnet_forward_padded.1} parent=1 // pred_region
      _
    $region29: #{_controlnet_forward_padded.1} parent=1 // pred_fallthru
      _
    // Predicated region
    $region30: #{_controlnet_forward_padded.1} parent=1 // pred_check
      _
    $region31: #{_controlnet_forward_padded.1} parent=1 // pred_check_branch
      %62 = sbr.rel (0) target = $region33
    $region32: #{_controlnet_forward_padded.1} parent=1 // pred_region
      %64 = dma.done [#allocation3], 4096
    $region33: #{_controlnet_forward_padded.1} parent=1 // pred_fallthru
      _
    // Predicated region
    $region34: #{_controlnet_forward_padded.1} parent=1 // pred_check
      _
    $region35: #{_controlnet_forward_padded.1} parent=1 // pred_check_branch
      %66 = sbr.rel (0) target = $region37
    $region36: #{_controlnet_forward_padded.1} parent=1 // pred_region
      %68 = dma.done [#allocation5], 8192
    $region37: #{_controlnet_forward_padded.1} parent=1 // pred_fallthru
      _
    // Predicated region
    $region38: #{_controlnet_forward_padded.1} parent=1 // pred_check
      _
    $region39: #{_controlnet_forward_padded.1} parent=1 // pred_check_branch
      %70 = sbr.rel (0) target = $region41
    $region40: #{_controlnet_forward_padded.1} parent=1 // pred_region
      %72 = dma.done [#allocation5], 8192
    $region41: #{_controlnet_forward_padded.1} parent=1 // pred_fallthru
      _
    %v73 = vld [vmem:[%s0] sm:$0xff]
    %v74 = vld [vmem:[#allocation2] sm:$0xff]
    %v75 = vld [vmem:[#allocation2 + $0x8] sm:$0xff]
    %v76 = vld [vmem:[#allocation2 + $0x10] sm:$0xff]
    %v77 = vld [vmem:[#allocation2 + $0x18] sm:$0xff]
    %v78 = vld [vmem:[#allocation2 + $0x20] sm:$0xff]
    %v79 = vld [vmem:[#allocation2 + $0x28] sm:$0xff]
    %v80 = vld [vmem:[#allocation2 + $0x30] sm:$0xff]
    %v81 = vld [vmem:[#allocation2 + $0x38] sm:$0xff]
    %v82 = vld [vmem:[#allocation2 + $0x40] sm:$0xff]
    %v83 = vld [vmem:[#allocation2 + $0x48] sm:$0xff]
    %v84 = vld [vmem:[#allocation2 + $0x50] sm:$0xff]
    %v85 = vld [vmem:[#allocation2 + $0x58] sm:$0xff]
    %v86 = vld [vmem:[#allocation2 + $0x60] sm:$0xff]
    %v87 = vld [vmem:[#allocation2 + $0x68] sm:$0xff]
    %v88 = vld [vmem:[#allocation2 + $0x70] sm:$0xff]
    %v89 = vld [vmem:[#allocation2 + $0x78] sm:$0xff]
    %v90 = vld [vmem:[#allocation2 + $0x80] sm:$0xff]
    %v91 = vld [vmem:[#allocation2 + $0x88] sm:$0xff]
    %v92 = vld [vmem:[#allocation2 + $0x90] sm:$0xff]
    %v93 = vld [vmem:[#allocation2 + $0x98] sm:$0xff]
    %v94 = vld [vmem:[#allocation2 + $0xa0] sm:$0xff]
    %v95 = vld [vmem:[#allocation2 + $0xa8] sm:$0xff]
    %v96 = vld [vmem:[#allocation2 + $0xb0] sm:$0xff]
    %v97 = vld [vmem:[#allocation2 + $0xb8] sm:$0xff]
    %v98 = vld [vmem:[#allocation2 + $0xc0] sm:$0xff]
    %v99 = vld [vmem:[#allocation2 + $0xc8] sm:$0xff]
    %v100 = vld [vmem:[#allocation2 + $0xd0] sm:$0xff]
    %v101 = vld [vmem:[#allocation2 + $0xd8] sm:$0xff]
    %v102 = vld [vmem:[#allocation2 + $0xe0] sm:$0xff]
    %v103 = vld [vmem:[#allocation2 + $0xe8] sm:$0xff]
    %v104 = vld [vmem:[#allocation2 + $0xf0] sm:$0xff]
    %v105 = vld [vmem:[#allocation2 + $0xf8] sm:$0xff]
    %v106 = vld [vmem:[%s2] sm:$0x3]
    %v108 = vperm.slane %v106, 0
    %v109 = vperm.slane %v106, 1
    %112 = vmatpush.msra.mxu0 %v104
    %113 = vmatpush.msra.mxu0 %v102
    %114 = vmatpush.msra.mxu0 %v100
    %115 = vmatpush.msra.mxu0 %v98
    %116 = vmatpush.msra.mxu0 %v96
    %117 = vmatpush.msra.mxu0 %v94
    %118 = vmatpush.msra.mxu0 %v92
    %119 = vmatpush.msra.mxu0 %v90
    %120 = vmatpush.msra.mxu0 %v88
    %121 = vmatpush.msra.mxu0 %v86
    %122 = vmatpush.msra.mxu0 %v84
    %123 = vmatpush.msra.mxu0 %v82
    %124 = vmatpush.msra.mxu0 %v80
    %125 = vmatpush.msra.mxu0 %v78
    %126 = vmatpush.msra.mxu0 %v76
    %127 = vmatpush.msra.mxu0 %v74
    %128 = vmatmul.f32.gmra.mxu0 %v73
    %v129 = vpop.f32.mrf.mxu0
    %v130 = vadd.f32 %v108, %v129
    %131 = vdwg.mxu0
    %132 = vmatpush.msra.mxu0 %v105
    %133 = vmatpush.msra.mxu0 %v103
    %134 = vmatpush.msra.mxu0 %v101
    %135 = vmatpush.msra.mxu0 %v99
    %136 = vmatpush.msra.mxu0 %v97
    %137 = vmatpush.msra.mxu0 %v95
    %138 = vmatpush.msra.mxu0 %v93
    %139 = vmatpush.msra.mxu0 %v91
    %140 = vmatpush.msra.mxu0 %v89
    %141 = vmatpush.msra.mxu0 %v87
    %142 = vmatpush.msra.mxu0 %v85
    %143 = vmatpush.msra.mxu0 %v83
    %144 = vmatpush.msra.mxu0 %v81
    %145 = vmatpush.msra.mxu0 %v79
    %146 = vmatpush.msra.mxu0 %v77
    %147 = vmatpush.msra.mxu0 %v75
    %148 = vmatmul.f32.gmra.mxu0 %v73
    %v149 = vpop.f32.mrf.mxu0
    %v150 = vadd.f32 %v109, %v149
    %151 = vdwg.mxu0
    %v152 = vmax.f32 %v130, 0.0
    %v153 = vmax.f32 %v150, 0.0
    %v154 = vld [vmem:[#allocation4] sm:$0xff]
    %v155 = vld [vmem:[#allocation4 + $0x8] sm:$0xff]
    %v156 = vld [vmem:[#allocation4 + $0x10] sm:$0xff]
    %v157 = vld [vmem:[#allocation4 + $0x18] sm:$0xff]
    %v158 = vld [vmem:[#allocation4 + $0x20] sm:$0xff]
    %v159 = vld [vmem:[#allocation4 + $0x28] sm:$0xff]
    %v160 = vld [vmem:[#allocation4 + $0x30] sm:$0xff]
    %v161 = vld [vmem:[#allocation4 + $0x38] sm:$0xff]
    %v162 = vld [vmem:[#allocation4 + $0x40] sm:$0xff]
    %v163 = vld [vmem:[#allocation4 + $0x48] sm:$0xff]
    %v164 = vld [vmem:[#allocation4 + $0x50] sm:$0xff]
    %v165 = vld [vmem:[#allocation4 + $0x58] sm:$0xff]
    %v166 = vld [vmem:[#allocation4 + $0x60] sm:$0xff]
    %v167 = vld [vmem:[#allocation4 + $0x68] sm:$0xff]
    %v168 = vld [vmem:[#allocation4 + $0x70] sm:$0xff]
    %v169 = vld [vmem:[#allocation4 + $0x78] sm:$0xff]
    %v170 = vld [vmem:[#allocation4 + $0x80] sm:$0xff]
    %v171 = vld [vmem:[#allocation4 + $0x88] sm:$0xff]
    %v172 = vld [vmem:[#allocation4 + $0x90] sm:$0xff]
    %v173 = vld [vmem:[#allocation4 + $0x98] sm:$0xff]
    %v174 = vld [vmem:[#allocation4 + $0xa0] sm:$0xff]
    %v175 = vld [vmem:[#allocation4 + $0xa8] sm:$0xff]
    %v176 = vld [vmem:[#allocation4 + $0xb0] sm:$0xff]
    %v177 = vld [vmem:[#allocation4 + $0xb8] sm:$0xff]
    %v178 = vld [vmem:[#allocation4 + $0xc0] sm:$0xff]
    %v179 = vld [vmem:[#allocation4 + $0xc8] sm:$0xff]
    %v180 = vld [vmem:[#allocation4 + $0xd0] sm:$0xff]
    %v181 = vld [vmem:[#allocation4 + $0xd8] sm:$0xff]
    %v182 = vld [vmem:[#allocation4 + $0xe0] sm:$0xff]
    %v183 = vld [vmem:[#allocation4 + $0xe8] sm:$0xff]
    %v184 = vld [vmem:[#allocation4 + $0xf0] sm:$0xff]
    %v185 = vld [vmem:[#allocation4 + $0xf8] sm:$0xff]
    %v186 = vld [vmem:[#allocation4 + $0x100] sm:$0xff]
    %v187 = vld [vmem:[#allocation4 + $0x108] sm:$0xff]
    %v188 = vld [vmem:[#allocation4 + $0x110] sm:$0xff]
    %v189 = vld [vmem:[#allocation4 + $0x118] sm:$0xff]
    %v190 = vld [vmem:[#allocation4 + $0x120] sm:$0xff]
    %v191 = vld [vmem:[#allocation4 + $0x128] sm:$0xff]
    %v192 = vld [vmem:[#allocation4 + $0x130] sm:$0xff]
    %v193 = vld [vmem:[#allocation4 + $0x138] sm:$0xff]
    %v194 = vld [vmem:[#allocation4 + $0x140] sm:$0xff]
    %v195 = vld [vmem:[#allocation4 + $0x148] sm:$0xff]
    %v196 = vld [vmem:[#allocation4 + $0x150] sm:$0xff]
    %v197 = vld [vmem:[#allocation4 + $0x158] sm:$0xff]
    %v198 = vld [vmem:[#allocation4 + $0x160] sm:$0xff]
    %v199 = vld [vmem:[#allocation4 + $0x168] sm:$0xff]
    %v200 = vld [vmem:[#allocation4 + $0x170] sm:$0xff]
    %v201 = vld [vmem:[#allocation4 + $0x178] sm:$0xff]
    %v202 = vld [vmem:[#allocation4 + $0x180] sm:$0xff]
    %v203 = vld [vmem:[#allocation4 + $0x188] sm:$0xff]
    %v204 = vld [vmem:[#allocation4 + $0x190] sm:$0xff]
    %v205 = vld [vmem:[#allocation4 + $0x198] sm:$0xff]
    %v206 = vld [vmem:[#allocation4 + $0x1a0] sm:$0xff]
    %v207 = vld [vmem:[#allocation4 + $0x1a8] sm:$0xff]
    %v208 = vld [vmem:[#allocation4 + $0x1b0] sm:$0xff]
    %v209 = vld [vmem:[#allocation4 + $0x1b8] sm:$0xff]
    %v210 = vld [vmem:[#allocation4 + $0x1c0] sm:$0xff]
    %v211 = vld [vmem:[#allocation4 + $0x1c8] sm:$0xff]
    %v212 = vld [vmem:[#allocation4 + $0x1d0] sm:$0xff]
    %v213 = vld [vmem:[#allocation4 + $0x1d8] sm:$0xff]
    %v214 = vld [vmem:[#allocation4 + $0x1e0] sm:$0xff]
    %v215 = vld [vmem:[#allocation4 + $0x1e8] sm:$0xff]
    %v216 = vld [vmem:[#allocation4 + $0x1f0] sm:$0xff]
    %v217 = vld [vmem:[#allocation4 + $0x1f8] sm:$0xff]
    %v218 = vld [vmem:[%s4] sm:$0x3]
    %v220 = vperm.slane %v218, 0
    %v221 = vperm.slane %v218, 1
    %224 = vmatpush.msra.mxu0 %v184
    %225 = vmatpush.msra.mxu0 %v182
    %226 = vmatpush.msra.mxu0 %v180
    %227 = vmatpush.msra.mxu0 %v178
    %228 = vmatpush.msra.mxu0 %v176
    %229 = vmatpush.msra.mxu0 %v174
    %230 = vmatpush.msra.mxu0 %v172
    %231 = vmatpush.msra.mxu0 %v170
    %232 = vmatpush.msra.mxu0 %v168
    %233 = vmatpush.msra.mxu0 %v166
    %234 = vmatpush.msra.mxu0 %v164
    %235 = vmatpush.msra.mxu0 %v162
    %236 = vmatpush.msra.mxu0 %v160
    %237 = vmatpush.msra.mxu0 %v158
    %238 = vmatpush.msra.mxu0 %v156
    %239 = vmatpush.msra.mxu0 %v154
    %240 = vmatmul.f32.gmra.mxu0 %v152
    %v241 = vpop.f32.mrf.mxu0
    %v242 = vadd.f32 %v220, %v241
    %243 = vdwg.mxu0
    %244 = vmatpush.msra.mxu0 %v216
    %245 = vmatpush.msra.mxu0 %v214
    %246 = vmatpush.msra.mxu0 %v212
    %247 = vmatpush.msra.mxu0 %v210
    %248 = vmatpush.msra.mxu0 %v208
    %249 = vmatpush.msra.mxu0 %v206
    %250 = vmatpush.msra.mxu0 %v204
    %251 = vmatpush.msra.mxu0 %v202
    %252 = vmatpush.msra.mxu0 %v200
    %253 = vmatpush.msra.mxu0 %v198
    %254 = vmatpush.msra.mxu0 %v196
    %255 = vmatpush.msra.mxu0 %v194
    %256 = vmatpush.msra.mxu0 %v192
    %257 = vmatpush.msra.mxu0 %v190
    %258 = vmatpush.msra.mxu0 %v188
    %259 = vmatpush.msra.mxu0 %v186
    %260 = vmatmul.f32.gmra.mxu0 %v153
    %v261 = vpop.f32.mrf.mxu0
    %v262 = vadd.f32 %v242, %v261
    %263 = vdwg.mxu0
    %264 = vmatpush.msra.mxu0 %v185
    %265 = vmatpush.msra.mxu0 %v183
    %266 = vmatpush.msra.mxu0 %v181
    %267 = vmatpush.msra.mxu0 %v179
    %268 = vmatpush.msra.mxu0 %v177
    %269 = vmatpush.msra.mxu0 %v175
    %270 = vmatpush.msra.mxu0 %v173
    %271 = vmatpush.msra.mxu0 %v171
    %272 = vmatpush.msra.mxu0 %v169
    %273 = vmatpush.msra.mxu0 %v167
    %274 = vmatpush.msra.mxu0 %v165
    %275 = vmatpush.msra.mxu0 %v163
    %276 = vmatpush.msra.mxu0 %v161
    %277 = vmatpush.msra.mxu0 %v159
    %278 = vmatpush.msra.mxu0 %v157
    %279 = vmatpush.msra.mxu0 %v155
    %280 = vmatmul.f32.gmra.mxu0 %v152
    %v281 = vpop.f32.mrf.mxu0
    %v282 = vadd.f32 %v221, %v281
    %283 = vdwg.mxu0
    %284 = vmatpush.msra.mxu0 %v217
    %285 = vmatpush.msra.mxu0 %v215
    %286 = vmatpush.msra.mxu0 %v213
    %287 = vmatpush.msra.mxu0 %v211
    %288 = vmatpush.msra.mxu0 %v209
    %289 = vmatpush.msra.mxu0 %v207
    %290 = vmatpush.msra.mxu0 %v205
    %291 = vmatpush.msra.mxu0 %v203
    %292 = vmatpush.msra.mxu0 %v201
    %293 = vmatpush.msra.mxu0 %v199
    %294 = vmatpush.msra.mxu0 %v197
    %295 = vmatpush.msra.mxu0 %v195
    %296 = vmatpush.msra.mxu0 %v193
    %297 = vmatpush.msra.mxu0 %v191
    %298 = vmatpush.msra.mxu0 %v189
    %299 = vmatpush.msra.mxu0 %v187
    %300 = vmatmul.f32.gmra.mxu0 %v153
    %v301 = vpop.f32.mrf.mxu0
    %v302 = vadd.f32 %v282, %v301
    %303 = vdwg.mxu0
    %v304 = vmax.f32 %v262, 0.0
    %v305 = vmax.f32 %v302, 0.0
    %v306 = vld [vmem:[#allocation6] sm:$0xff]
    %v307 = vld [vmem:[#allocation6 + $0x8] sm:$0xff]
    %v308 = vld [vmem:[#allocation6 + $0x10] sm:$0xff]
    %v309 = vld [vmem:[#allocation6 + $0x18] sm:$0xff]
    %v310 = vld [vmem:[#allocation6 + $0x20] sm:$0xff]
    %v311 = vld [vmem:[#allocation6 + $0x28] sm:$0xff]
    %v312 = vld [vmem:[#allocation6 + $0x30] sm:$0xff]
    %v313 = vld [vmem:[#allocation6 + $0x38] sm:$0xff]
    %v314 = vld [vmem:[#allocation6 + $0x40] sm:$0xff]
    %v315 = vld [vmem:[#allocation6 + $0x48] sm:$0xff]
    %v316 = vld [vmem:[#allocation6 + $0x50] sm:$0xff]
    %v317 = vld [vmem:[#allocation6 + $0x58] sm:$0xff]
    %v318 = vld [vmem:[#allocation6 + $0x60] sm:$0xff]
    %v319 = vld [vmem:[#allocation6 + $0x68] sm:$0xff]
    %v320 = vld [vmem:[#allocation6 + $0x70] sm:$0xff]
    %v321 = vld [vmem:[#allocation6 + $0x78] sm:$0xff]
    %v322 = vld [vmem:[#allocation6 + $0x80] sm:$0xff]
    %v323 = vld [vmem:[#allocation6 + $0x88] sm:$0xff]
    %v324 = vld [vmem:[#allocation6 + $0x90] sm:$0xff]
    %v325 = vld [vmem:[#allocation6 + $0x98] sm:$0xff]
    %v326 = vld [vmem:[#allocation6 + $0xa0] sm:$0xff]
    %v327 = vld [vmem:[#allocation6 + $0xa8] sm:$0xff]
    %v328 = vld [vmem:[#allocation6 + $0xb0] sm:$0xff]
    %v329 = vld [vmem:[#allocation6 + $0xb8] sm:$0xff]
    %v330 = vld [vmem:[#allocation6 + $0xc0] sm:$0xff]
    %v331 = vld [vmem:[#allocation6 + $0xc8] sm:$0xff]
    %v332 = vld [vmem:[#allocation6 + $0xd0] sm:$0xff]
    %v333 = vld [vmem:[#allocation6 + $0xd8] sm:$0xff]
    %v334 = vld [vmem:[#allocation6 + $0xe0] sm:$0xff]
    %v335 = vld [vmem:[#allocation6 + $0xe8] sm:$0xff]
    %v336 = vld [vmem:[#allocation6 + $0xf0] sm:$0xff]
    %v337 = vld [vmem:[#allocation6 + $0xf8] sm:$0xff]
    %v338 = vld [vmem:[#allocation6 + $0x100] sm:$0xff]
    %v339 = vld [vmem:[#allocation6 + $0x108] sm:$0xff]
    %v340 = vld [vmem:[#allocation6 + $0x110] sm:$0xff]
    %v341 = vld [vmem:[#allocation6 + $0x118] sm:$0xff]
    %v342 = vld [vmem:[#allocation6 + $0x120] sm:$0xff]
    %v343 = vld [vmem:[#allocation6 + $0x128] sm:$0xff]
    %v344 = vld [vmem:[#allocation6 + $0x130] sm:$0xff]
    %v345 = vld [vmem:[#allocation6 + $0x138] sm:$0xff]
    %v346 = vld [vmem:[#allocation6 + $0x140] sm:$0xff]
    %v347 = vld [vmem:[#allocation6 + $0x148] sm:$0xff]
    %v348 = vld [vmem:[#allocation6 + $0x150] sm:$0xff]
    %v349 = vld [vmem:[#allocation6 + $0x158] sm:$0xff]
    %v350 = vld [vmem:[#allocation6 + $0x160] sm:$0xff]
    %v351 = vld [vmem:[#allocation6 + $0x168] sm:$0xff]
    %v352 = vld [vmem:[#allocation6 + $0x170] sm:$0xff]
    %v353 = vld [vmem:[#allocation6 + $0x178] sm:$0xff]
    %v354 = vld [vmem:[#allocation6 + $0x180] sm:$0xff]
    %v355 = vld [vmem:[#allocation6 + $0x188] sm:$0xff]
    %v356 = vld [vmem:[#allocation6 + $0x190] sm:$0xff]
    %v357 = vld [vmem:[#allocation6 + $0x198] sm:$0xff]
    %v358 = vld [vmem:[#allocation6 + $0x1a0] sm:$0xff]
    %v359 = vld [vmem:[#allocation6 + $0x1a8] sm:$0xff]
    %v360 = vld [vmem:[#allocation6 + $0x1b0] sm:$0xff]
    %v361 = vld [vmem:[#allocation6 + $0x1b8] sm:$0xff]
    %v362 = vld [vmem:[#allocation6 + $0x1c0] sm:$0xff]
    %v363 = vld [vmem:[#allocation6 + $0x1c8] sm:$0xff]
    %v364 = vld [vmem:[#allocation6 + $0x1d0] sm:$0xff]
    %v365 = vld [vmem:[#allocation6 + $0x1d8] sm:$0xff]
    %v366 = vld [vmem:[#allocation6 + $0x1e0] sm:$0xff]
    %v367 = vld [vmem:[#allocation6 + $0x1e8] sm:$0xff]
    %v368 = vld [vmem:[#allocation6 + $0x1f0] sm:$0xff]
    %v369 = vld [vmem:[#allocation6 + $0x1f8] sm:$0xff]
    %v370 = vld [vmem:[%s6] sm:$0x3]
    %v372 = vperm.slane %v370, 0
    %v373 = vperm.slane %v370, 1
    %376 = vmatpush.msra.mxu0 %v336
    %377 = vmatpush.msra.mxu0 %v334
    %378 = vmatpush.msra.mxu0 %v332
    %379 = vmatpush.msra.mxu0 %v330
    %380 = vmatpush.msra.mxu0 %v328
    %381 = vmatpush.msra.mxu0 %v326
    %382 = vmatpush.msra.mxu0 %v324
    %383 = vmatpush.msra.mxu0 %v322
    %384 = vmatpush.msra.mxu0 %v320
    %385 = vmatpush.msra.mxu0 %v318
    %386 = vmatpush.msra.mxu0 %v316
    %387 = vmatpush.msra.mxu0 %v314
    %388 = vmatpush.msra.mxu0 %v312
    %389 = vmatpush.msra.mxu0 %v310
    %390 = vmatpush.msra.mxu0 %v308
    %391 = vmatpush.msra.mxu0 %v306
    %392 = vmatmul.f32.gmra.mxu0 %v304
    %v393 = vpop.f32.mrf.mxu0
    %v394 = vadd.f32 %v372, %v393
    %395 = vdwg.mxu0
    %396 = vmatpush.msra.mxu0 %v368
    %397 = vmatpush.msra.mxu0 %v366
    %398 = vmatpush.msra.mxu0 %v364
    %399 = vmatpush.msra.mxu0 %v362
    %400 = vmatpush.msra.mxu0 %v360
    %401 = vmatpush.msra.mxu0 %v358
    %402 = vmatpush.msra.mxu0 %v356
    %403 = vmatpush.msra.mxu0 %v354
    %404 = vmatpush.msra.mxu0 %v352
    %405 = vmatpush.msra.mxu0 %v350
    %406 = vmatpush.msra.mxu0 %v348
    %407 = vmatpush.msra.mxu0 %v346
    %408 = vmatpush.msra.mxu0 %v344
    %409 = vmatpush.msra.mxu0 %v342
    %410 = vmatpush.msra.mxu0 %v340
    %411 = vmatpush.msra.mxu0 %v338
    %412 = vmatmul.f32.gmra.mxu0 %v305
    %v413 = vpop.f32.mrf.mxu0
    %v414 = vadd.f32 %v394, %v413
    %415 = vdwg.mxu0
    %416 = vmatpush.msra.mxu0 %v337
    %417 = vmatpush.msra.mxu0 %v335
    %418 = vmatpush.msra.mxu0 %v333
    %419 = vmatpush.msra.mxu0 %v331
    %420 = vmatpush.msra.mxu0 %v329
    %421 = vmatpush.msra.mxu0 %v327
    %422 = vmatpush.msra.mxu0 %v325
    %423 = vmatpush.msra.mxu0 %v323
    %424 = vmatpush.msra.mxu0 %v321
    %425 = vmatpush.msra.mxu0 %v319
    %426 = vmatpush.msra.mxu0 %v317
    %427 = vmatpush.msra.mxu0 %v315
    %428 = vmatpush.msra.mxu0 %v313
    %429 = vmatpush.msra.mxu0 %v311
    %430 = vmatpush.msra.mxu0 %v309
    %431 = vmatpush.msra.mxu0 %v307
    %432 = vmatmul.f32.gmra.mxu0 %v304
    %v433 = vpop.f32.mrf.mxu0
    %v434 = vadd.f32 %v373, %v433
    %435 = vdwg.mxu0
    %436 = vmatpush.msra.mxu0 %v369
    %437 = vmatpush.msra.mxu0 %v367
    %438 = vmatpush.msra.mxu0 %v365
    %439 = vmatpush.msra.mxu0 %v363
    %440 = vmatpush.msra.mxu0 %v361
    %441 = vmatpush.msra.mxu0 %v359
    %442 = vmatpush.msra.mxu0 %v357
    %443 = vmatpush.msra.mxu0 %v355
    %444 = vmatpush.msra.mxu0 %v353
    %445 = vmatpush.msra.mxu0 %v351
    %446 = vmatpush.msra.mxu0 %v349
    %447 = vmatpush.msra.mxu0 %v347
    %448 = vmatpush.msra.mxu0 %v345
    %449 = vmatpush.msra.mxu0 %v343
    %450 = vmatpush.msra.mxu0 %v341
    %451 = vmatpush.msra.mxu0 %v339
    %452 = vmatmul.f32.gmra.mxu0 %v305
    %v453 = vpop.f32.mrf.mxu0
    %v454 = vadd.f32 %v434, %v453
    %455 = vdwg.mxu0
    %456 = vst [vmem:[%s7] sm:$0xff] %v414
    %457 = vst [vmem:[%s7 + $0x8] sm:$0xff] %v454
    // Predicated region
    $region42: #{_controlnet_forward_padded.1} parent=1 // pred_check
      _
    $region43: #{_controlnet_forward_padded.1} parent=1 // pred_check_branch
      %459 = sbr.rel (0) target = $region45
    $region44: #{_controlnet_forward_padded.1} parent=1 // pred_region
      _
    $region45: #{_controlnet_forward_padded.1} parent=1 // pred_fallthru
      _
    // Predicated region
    $region46: #{_controlnet_forward_padded.1} parent=1 // pred_check
      _
    $region47: #{_controlnet_forward_padded.1} parent=1 // pred_check_branch
      %461 = sbr.rel (0) target = $region49
    $region48: #{_controlnet_forward_padded.1} parent=1 // pred_region
      _
    $region49: #{_controlnet_forward_padded.1} parent=1 // pred_fallthru
      _
    %462 = vsyncpa [#allocation3], 1
    %463 = vsyncpa [#allocation5], 1

</llo_original>
